<compile_context>
chip_gen: v7x
topology: tpu7x:2x2x1
jax: 0.10.0
libtpu: 0.0.40
codegen_flags: <defaults>
</compile_context>

<pallas_src>
import math

import jax
import jax.numpy as jnp
from jax import lax
from jax.experimental import pallas as pl
from jax.experimental.pallas import tpu as pltpu

LN_EPS = 1e-5  # nn.LayerNorm default


# ----------------------------------------------------------------------------
# Fused kernel: whole forward pass (both batch elements) in one invocation.
# ----------------------------------------------------------------------------
def _scaling1_reducer_kernel(x_ref, wcol_ref, wq_ref, wk_ref, wv_ref,
                             g_ref, bln_ref, wh_ref, bh_ref, o_ref):
    S = wcol_ref.shape[0]
    BS, E = x_ref.shape
    B = BS // S
    A = wq_ref.shape[1]
    F2 = wh_ref.shape[1]                   # fused head width = 2*E
    scale = 1.0 / math.sqrt(A)

    x2 = x_ref[...]                        # (B*S, E)
    wcol = wcol_ref[...]                   # (S, 1)  -- w_s as a column
    wq = wq_ref[...]                       # (E, A)
    gamma = g_ref[...]                     # (1, A)
    beta = bln_ref[...]                    # (1, A)
    wh = wh_ref[...]                       # (E, 2E)
    bh = bh_ref[...]                       # (1, 2E)

    # Batched K/V projections for all batch rows at once (MXU).  These are
    # independent of the q path below and overlap with its VPU/XLU work.
    k2 = jnp.dot(x2, wk_ref[...], preferred_element_type=jnp.float32)   # (B*S, A)
    v2 = jnp.dot(x2, wv_ref[...], preferred_element_type=jnp.float32)   # (B*S, A)

    # Per-batch attention path.  B is a static Python int -> fully unrolled;
    # the B chains are independent, so their latencies interleave on one TC.
    for b in range(B):
        xb = x2[b * S:(b + 1) * S, :]      # (S, E) static sublane slice
        kb = k2[b * S:(b + 1) * S, :]      # (S, A)
        vb = v2[b * S:(b + 1) * S, :]      # (S, A)

        # q refactor: (w_s @ x) @ Wq.  Token reduction first (VPU multiply +
        # sublane reduction), then one small E-contraction on the MXU.
        q_red = jnp.sum(xb * wcol, axis=0, keepdims=True)               # (1, E)
        qb = jnp.dot(q_red, wq, preferred_element_type=jnp.float32)     # (1, A)

        # Scores q.k^T: VPU multiply + lane reduction (no 1-row MXU matmul).
        sb = jnp.sum(kb * qb, axis=-1, keepdims=True) * scale           # (S, 1)
        # Numerically-stable softmax over keys (sublane axis); exact divide
        # for parity with the PyTorch reference.
        sb = sb - jnp.max(sb, axis=0, keepdims=True)
        eb = jnp.exp(sb)
        pb = eb / jnp.sum(eb, axis=0, keepdims=True)                    # (S, 1)

        # p @ v: VPU multiply + sublane reduction.
        att = jnp.sum(pb * vb, axis=0, keepdims=True)                   # (1, A)

        # LayerNorm over the feature dim (lane reductions).
        mu = jnp.mean(att, axis=-1, keepdims=True)
        xc = att - mu
        var = jnp.mean(xc * xc, axis=-1, keepdims=True)
        rb = xc * lax.rsqrt(var + LN_EPS) * gamma + beta                # (1, A)

        # Fused mean|logvar heads: (1, E) @ (E, 2E) + (1, 2E)  (MXU).
        ob = jnp.dot(rb, wh, preferred_element_type=jnp.float32) + bh   # (1, 2E)

        # Lane-dense output slab: batch b fills lanes [b*2E, (b+1)*2E).
        o_ref[:, b * F2:(b + 1) * F2] = ob.astype(o_ref.dtype)


def scaling1_reducer(params, hidden_states, attention_mask=None):
    """hidden_states: (B, S, E). Returns (mean, logvar), each (B, 1, E)."""
    del attention_mask  # unused by the PyTorch forward as well
    x = hidden_states
    B, S, E = x.shape
    wq, wk, wv = params["wq"], params["wk"], params["wv"]     # (E, A) each
    A = wq.shape[1]
    assert A == E, "attention_dim must equal embed_dim (Conv1D head input)"
    w_s = params["w_s"]            # (1, S)
    gamma = params["gamma"]        # (1, A)
    beta = params["beta"]          # (1, A)
    wh = params["w_heads"]         # (E, 2E)   fused [W_mean | W_logvar]
    bh = params["b_heads"]         # (1, 2E)

    # Free XLA-level reshapes: one batched K/V projection inside the kernel,
    # and w_s presented as a column for the in-kernel token reduction.
    x2 = x.reshape(B * S, E)
    wcol = w_s.reshape(S, 1)

    # Advisory cost hint for the XLA scheduler.
    flops = (2 * 2 * (B * S) * E * A                 # K, V projections
             + B * (2 * S * E                        # w_s . x
                    + 2 * E * A                      # q_red @ Wq
                    + 2 * S * A + 2 * S * A          # q.k^T, p.v
                    + 2 * E * 2 * E))                # fused heads
    bytes_accessed = 4 * (x.size + wq.size + wk.size + wv.size + w_s.size
                          + gamma.size + beta.size + wh.size + bh.size
                          + B * 2 * E)
    cost = pl.CostEstimate(flops=flops, transcendentals=B * (S + 1),
                           bytes_accessed=bytes_accessed)

    # Single invocation (grid=(1,)).  On v7x one could use grid=(B,) with
    # dimension_semantics=("parallel",) to split batches across the 2 TCs —
    # only if profiling shows the per-core prologue is cheaper than the split.
    out = pl.pallas_call(
        _scaling1_reducer_kernel,
        out_shape=jax.ShapeDtypeStruct((1, B * 2 * E), jnp.float32),
        grid=(1,),
        in_specs=[
            pl.BlockSpec((B * S, E), lambda i: (0, 0)),       # x (flattened)
            pl.BlockSpec((S, 1), lambda i: (0, 0)),           # w_s column
            pl.BlockSpec((E, A), lambda i: (0, 0)),           # Wq
            pl.BlockSpec((E, A), lambda i: (0, 0)),           # Wk
            pl.BlockSpec((E, A), lambda i: (0, 0)),           # Wv
            pl.BlockSpec((1, A), lambda i: (0, 0)),           # gamma
            pl.BlockSpec((1, A), lambda i: (0, 0)),           # beta
            pl.BlockSpec((E, 2 * E), lambda i: (0, 0)),       # W_mean|W_logvar
            pl.BlockSpec((1, 2 * E), lambda i: (0, 0)),       # b_mean|b_logvar
        ],
        out_specs=pl.BlockSpec((1, B * 2 * E), lambda i: (0, 0)),
        compiler_params=pltpu.CompilerParams(
            dimension_semantics=("arbitrary",)),
        cost_estimate=cost,
    )(x2, wcol, wq, wk, wv, gamma, beta, wh, bh)

    out = out.reshape(B, 2 * E)            # lanes: [mean_b | logvar_b] per row
    mean = out[:, :E].reshape(B, 1, E)
    logvar = out[:, E:].reshape(B, 1, E)
    return mean, logvar


# ----------------------------------------------------------------------------
# Parameter construction (deterministic, synthetic) + pure-JAX reference.
# ----------------------------------------------------------------------------
def _xavier_uniform(key, shape):
    fan_out, fan_in = shape
    bound = math.sqrt(6.0 / (fan_in + fan_out))
    return jax.random.uniform(key, shape, jnp.float32, -bound, bound)


def init_scaling1_reducer(key, embed_dim, attention_dim, max_length):
    kq, kk, kv, ks, km, kl = jax.random.split(key, 6)
    # nn.Linear weights are (out, in); store transposed (in, out).
    wq = _xavier_uniform(kq, (attention_dim, embed_dim)).T    # (E, A)
    wk = _xavier_uniform(kk, (attention_dim, embed_dim)).T
    wv = _xavier_uniform(kv, (attention_dim, embed_dim)).T
    w_s = _xavier_uniform(ks, (1, max_length))                # (1, S)
    gamma = jnp.ones((1, attention_dim), jnp.float32)
    beta = jnp.zeros((1, attention_dim), jnp.float32)
    # GPT-2 Conv1D: weight (nx, nf) ~ N(0, 0.02), bias zeros; fuse mean|logvar.
    w_mean = 0.02 * jax.random.normal(km, (embed_dim, embed_dim), jnp.float32)
    w_logvar = 0.02 * jax.random.normal(kl, (embed_dim, embed_dim), jnp.float32)
    w_heads = jnp.concatenate([w_mean, w_logvar], axis=1)     # (E, 2E)
    b_heads = jnp.zeros((1, 2 * embed_dim), jnp.float32)
    return dict(wq=wq, wk=wk, wv=wv, w_s=w_s, gamma=gamma, beta=beta,
                w_heads=w_heads, b_heads=b_heads)


def _reference(params, x):
    """Pure-JAX reference matching the PyTorch forward (for correctness)."""
    B, S, E = x.shape
    hp = lax.Precision.HIGHEST
    A = params["wq"].shape[1]
    q = jnp.einsum("bse,ea->bsa", x, params["wq"], precision=hp)
    q = jnp.einsum("ts,bsa->bta", params["w_s"], q, precision=hp)
    k = jnp.einsum("bse,ea->bsa", x, params["wk"], precision=hp)
    v = jnp.einsum("bse,ea->bsa", x, params["wv"], precision=hp)
    s = jnp.einsum("bta,bsa->bts", q, k, precision=hp) / math.sqrt(A)
    p = jax.nn.softmax(s, axis=-1)
    att = jnp.einsum("bts,bsa->bta", p, v, precision=hp)
    mu = att.mean(-1, keepdims=True)
    var = ((att - mu) ** 2).mean(-1, keepdims=True)
    r = (att - mu) * lax.rsqrt(var + LN_EPS) * params["gamma"] + params["beta"]
    o = jnp.einsum("bta,af->btf", r, params["w_heads"], precision=hp) + params["b_heads"]
    return o[..., :E], o[..., E:]


if __name__ == "__main__":
    B = 2
    max_length = 16
    embed_dim = 32
    attention_dim = 32   # must equal embed_dim for the Conv1D heads

    key = jax.random.PRNGKey(0)
    k_params, k_x = jax.random.split(key)
    params = init_scaling1_reducer(k_params, embed_dim, attention_dim, max_length)
    x = jax.random.normal(k_x, (B, max_length, embed_dim), jnp.float32)

    mean, logvar = scaling1_reducer(params, x)
    jax.block_until_ready((mean, logvar))

    assert mean.shape == (B, 1, embed_dim), mean.shape
    assert logvar.shape == (B, 1, embed_dim), logvar.shape
    assert jnp.all(jnp.isfinite(mean)) and jnp.all(jnp.isfinite(logvar))

    mean_ref, logvar_ref = _reference(params, x)
    assert jnp.allclose(mean, mean_ref, rtol=1e-3, atol=1e-3), \
        float(jnp.max(jnp.abs(mean - mean_ref)))
    assert jnp.allclose(logvar, logvar_ref, rtol=1e-3, atol=1e-3), \
        float(jnp.max(jnp.abs(logvar - logvar_ref)))

    print("KERNEL_OK")
</pallas_src>

<mosaic_0001>
module attributes {stable_mosaic.version = 11 : i64} {
  func.func @_scaling1_reducer_kernel(%arg0: i32, %arg1: memref<32x32xf32, #tpu.memory_space<vmem>>, %arg2: memref<16x1xf32, #tpu.memory_space<vmem>>, %arg3: memref<32x32xf32, #tpu.memory_space<vmem>>, %arg4: memref<32x32xf32, #tpu.memory_space<vmem>>, %arg5: memref<32x32xf32, #tpu.memory_space<vmem>>, %arg6: memref<1x32xf32, #tpu.memory_space<vmem>>, %arg7: memref<1x32xf32, #tpu.memory_space<vmem>>, %arg8: memref<32x64xf32, #tpu.memory_space<vmem>>, %arg9: memref<1x64xf32, #tpu.memory_space<vmem>>, %arg10: memref<1x128xf32, #tpu.memory_space<vmem>>) attributes {dimension_semantics = [#tpu.dimension_semantics<arbitrary>], iteration_bounds = array<i64: 1>, scalar_prefetch = 0 : i64, scratch_operands = 0 : i64, tpu.core_type = #tpu.core_type<tc>, window_params = [{pipeline_mode = #tpu.pipeline_mode<synchronous>, transform_indices = @transform_0, window_bounds = array<i64: 32, 32>}, {pipeline_mode = #tpu.pipeline_mode<synchronous>, transform_indices = @transform_1, window_bounds = array<i64: 16, 1>}, {pipeline_mode = #tpu.pipeline_mode<synchronous>, transform_indices = @transform_2, window_bounds = array<i64: 32, 32>}, {pipeline_mode = #tpu.pipeline_mode<synchronous>, transform_indices = @transform_3, window_bounds = array<i64: 32, 32>}, {pipeline_mode = #tpu.pipeline_mode<synchronous>, transform_indices = @transform_4, window_bounds = array<i64: 32, 32>}, {pipeline_mode = #tpu.pipeline_mode<synchronous>, transform_indices = @transform_5, window_bounds = array<i64: 1, 32>}, {pipeline_mode = #tpu.pipeline_mode<synchronous>, transform_indices = @transform_6, window_bounds = array<i64: 1, 32>}, {pipeline_mode = #tpu.pipeline_mode<synchronous>, transform_indices = @transform_7, window_bounds = array<i64: 32, 64>}, {pipeline_mode = #tpu.pipeline_mode<synchronous>, transform_indices = @transform_8, window_bounds = array<i64: 1, 64>}, {pipeline_mode = #tpu.pipeline_mode<synchronous>, transform_indices = @transform_9, window_bounds = array<i64: 1, 128>}]} {
    %c0 = arith.constant 0 : index
    %c0_0 = arith.constant 0 : index
    %0 = vector.load %arg1[%c0, %c0_0] : memref<32x32xf32, #tpu.memory_space<vmem>>, vector<32x32xf32>
    %c0_1 = arith.constant 0 : index
    %c0_2 = arith.constant 0 : index
    %1 = vector.load %arg2[%c0_1, %c0_2] : memref<16x1xf32, #tpu.memory_space<vmem>>, vector<16x1xf32>
    %c0_3 = arith.constant 0 : index
    %c0_4 = arith.constant 0 : index
    %2 = vector.load %arg3[%c0_3, %c0_4] : memref<32x32xf32, #tpu.memory_space<vmem>>, vector<32x32xf32>
    %c0_5 = arith.constant 0 : index
    %c0_6 = arith.constant 0 : index
    %3 = vector.load %arg6[%c0_5, %c0_6] : memref<1x32xf32, #tpu.memory_space<vmem>>, vector<1x32xf32>
    %c0_7 = arith.constant 0 : index
    %c0_8 = arith.constant 0 : index
    %4 = vector.load %arg7[%c0_7, %c0_8] : memref<1x32xf32, #tpu.memory_space<vmem>>, vector<1x32xf32>
    %c0_9 = arith.constant 0 : index
    %c0_10 = arith.constant 0 : index
    %5 = vector.load %arg8[%c0_9, %c0_10] : memref<32x64xf32, #tpu.memory_space<vmem>>, vector<32x64xf32>
    %c0_11 = arith.constant 0 : index
    %c0_12 = arith.constant 0 : index
    %6 = vector.load %arg9[%c0_11, %c0_12] : memref<1x64xf32, #tpu.memory_space<vmem>>, vector<1x64xf32>
    %c0_13 = arith.constant 0 : index
    %c0_14 = arith.constant 0 : index
    %7 = vector.load %arg4[%c0_13, %c0_14] : memref<32x32xf32, #tpu.memory_space<vmem>>, vector<32x32xf32>
    %cst = arith.constant dense<0.000000e+00> : vector<32x32xf32>
    %8 = tpu.matmul %0, %7, %cst {dimension_numbers = #tpu.dot_dimension_numbers<[1], [0], [0], [1], [0, 0, 1, 1], [], []>} : vector<32x32xf32>, vector<32x32xf32>, vector<32x32xf32> -> vector<32x32xf32>
    %c0_15 = arith.constant 0 : index
    %c0_16 = arith.constant 0 : index
    %9 = vector.load %arg5[%c0_15, %c0_16] : memref<32x32xf32, #tpu.memory_space<vmem>>, vector<32x32xf32>
    %cst_17 = arith.constant dense<0.000000e+00> : vector<32x32xf32>
    %10 = tpu.matmul %0, %9, %cst_17 {dimension_numbers = #tpu.dot_dimension_numbers<[1], [0], [0], [1], [0, 0, 1, 1], [], []>} : vector<32x32xf32>, vector<32x32xf32>, vector<32x32xf32> -> vector<32x32xf32>
    %11 = vector.extract_strided_slice %0 {offsets = [0, 0], sizes = [16, 32], strides = [1, 1]} : vector<32x32xf32> to vector<16x32xf32>
    %12 = vector.extract_strided_slice %8 {offsets = [0, 0], sizes = [16, 32], strides = [1, 1]} : vector<32x32xf32> to vector<16x32xf32>
    %13 = vector.extract_strided_slice %10 {offsets = [0, 0], sizes = [16, 32], strides = [1, 1]} : vector<32x32xf32> to vector<16x32xf32>
    %14 = vector.broadcast %1 : vector<16x1xf32> to vector<16x32xf32>
    %15 = arith.mulf %11, %14 : vector<16x32xf32>
    %cst_18 = arith.constant dense<0.000000e+00> : vector<32xf32>
    %16 = vector.multi_reduction <add>, %15, %cst_18 [0] : vector<16x32xf32> to vector<32xf32>
    %17 = vector.shape_cast %16 : vector<32xf32> to vector<1x32xf32>
    %cst_19 = arith.constant dense<0.000000e+00> : vector<1x32xf32>
    %18 = tpu.matmul %17, %2, %cst_19 {dimension_numbers = #tpu.dot_dimension_numbers<[1], [0], [0], [1], [0, 0, 1, 1], [], []>} : vector<1x32xf32>, vector<32x32xf32>, vector<1x32xf32> -> vector<1x32xf32>
    %19 = vector.broadcast %18 : vector<1x32xf32> to vector<16x32xf32>
    %20 = arith.mulf %12, %19 : vector<16x32xf32>
    %cst_20 = arith.constant dense<0.000000e+00> : vector<16xf32>
    %21 = vector.multi_reduction <add>, %20, %cst_20 [1] : vector<16x32xf32> to vector<16xf32>
    %22 = vector.shape_cast %21 : vector<16xf32> to vector<16x1xf32>
    %cst_21 = arith.constant 0.176776692 : f32
    %23 = vector.broadcast %cst_21 : f32 to vector<16x1xf32>
    %24 = arith.mulf %22, %23 : vector<16x1xf32>
    %cst_22 = arith.constant dense<0xFF800000> : vector<1xf32>
    %25 = vector.multi_reduction <maximumf>, %24, %cst_22 [0] : vector<16x1xf32> to vector<1xf32>
    %26 = vector.shape_cast %25 : vector<1xf32> to vector<1x1xf32>
    %27 = vector.broadcast %26 : vector<1x1xf32> to vector<16x1xf32>
    %28 = arith.subf %24, %27 : vector<16x1xf32>
    %29 = math.exp %28 : vector<16x1xf32>
    %cst_23 = arith.constant dense<0.000000e+00> : vector<1xf32>
    %30 = vector.multi_reduction <add>, %29, %cst_23 [0] : vector<16x1xf32> to vector<1xf32>
    %31 = vector.shape_cast %30 : vector<1xf32> to vector<1x1xf32>
    %32 = vector.broadcast %31 : vector<1x1xf32> to vector<16x1xf32>
    %33 = arith.divf %29, %32 : vector<16x1xf32>
    %34 = vector.broadcast %33 : vector<16x1xf32> to vector<16x32xf32>
    %35 = arith.mulf %34, %13 : vector<16x32xf32>
    %cst_24 = arith.constant dense<0.000000e+00> : vector<32xf32>
    %36 = vector.multi_reduction <add>, %35, %cst_24 [0] : vector<16x32xf32> to vector<32xf32>
    %37 = vector.shape_cast %36 : vector<32xf32> to vector<1x32xf32>
    %cst_25 = arith.constant dense<0.000000e+00> : vector<1xf32>
    %38 = vector.multi_reduction <add>, %37, %cst_25 [1] : vector<1x32xf32> to vector<1xf32>
    %39 = vector.shape_cast %38 : vector<1xf32> to vector<1x1xf32>
    %cst_26 = arith.constant 3.200000e+01 : f32
    %40 = vector.broadcast %cst_26 : f32 to vector<1x1xf32>
    %41 = arith.divf %39, %40 : vector<1x1xf32>
    %42 = vector.broadcast %41 : vector<1x1xf32> to vector<1x32xf32>
    %43 = arith.subf %37, %42 : vector<1x32xf32>
    %44 = arith.mulf %43, %43 : vector<1x32xf32>
    %cst_27 = arith.constant dense<0.000000e+00> : vector<1xf32>
    %45 = vector.multi_reduction <add>, %44, %cst_27 [1] : vector<1x32xf32> to vector<1xf32>
    %46 = vector.shape_cast %45 : vector<1xf32> to vector<1x1xf32>
    %cst_28 = arith.constant 3.200000e+01 : f32
    %47 = vector.broadcast %cst_28 : f32 to vector<1x1xf32>
    %48 = arith.divf %46, %47 : vector<1x1xf32>
    %cst_29 = arith.constant 9.99999974E-6 : f32
    %49 = vector.broadcast %cst_29 : f32 to vector<1x1xf32>
    %50 = arith.addf %48, %49 : vector<1x1xf32>
    %51 = math.rsqrt %50 : vector<1x1xf32>
    %52 = vector.broadcast %51 : vector<1x1xf32> to vector<1x32xf32>
    %53 = arith.mulf %43, %52 : vector<1x32xf32>
    %54 = arith.mulf %53, %3 : vector<1x32xf32>
    %55 = arith.addf %54, %4 : vector<1x32xf32>
    %cst_30 = arith.constant dense<0.000000e+00> : vector<1x64xf32>
    %56 = tpu.matmul %55, %5, %cst_30 {dimension_numbers = #tpu.dot_dimension_numbers<[1], [0], [0], [1], [0, 0, 1, 1], [], []>} : vector<1x32xf32>, vector<32x64xf32>, vector<1x64xf32> -> vector<1x64xf32>
    %57 = arith.addf %56, %6 : vector<1x64xf32>
    %c0_31 = arith.constant 0 : index
    %c0_32 = arith.constant 0 : index
    %58 = vector.load %arg10[%c0_31, %c0_32] : memref<1x128xf32, #tpu.memory_space<vmem>>, vector<1x64xf32>
    tpu.vector_store %arg10[%c0_31, %c0_32], %57 {strides = array<i32>} : memref<1x128xf32, #tpu.memory_space<vmem>>, vector<1x64xf32>,
    %59 = vector.extract_strided_slice %0 {offsets = [16, 0], sizes = [16, 32], strides = [1, 1]} : vector<32x32xf32> to vector<16x32xf32>
    %60 = vector.extract_strided_slice %8 {offsets = [16, 0], sizes = [16, 32], strides = [1, 1]} : vector<32x32xf32> to vector<16x32xf32>
    %61 = vector.extract_strided_slice %10 {offsets = [16, 0], sizes = [16, 32], strides = [1, 1]} : vector<32x32xf32> to vector<16x32xf32>
    %62 = vector.broadcast %1 : vector<16x1xf32> to vector<16x32xf32>
    %63 = arith.mulf %59, %62 : vector<16x32xf32>
    %cst_33 = arith.constant dense<0.000000e+00> : vector<32xf32>
    %64 = vector.multi_reduction <add>, %63, %cst_33 [0] : vector<16x32xf32> to vector<32xf32>
    %65 = vector.shape_cast %64 : vector<32xf32> to vector<1x32xf32>
    %cst_34 = arith.constant dense<0.000000e+00> : vector<1x32xf32>
    %66 = tpu.matmul %65, %2, %cst_34 {dimension_numbers = #tpu.dot_dimension_numbers<[1], [0], [0], [1], [0, 0, 1, 1], [], []>} : vector<1x32xf32>, vector<32x32xf32>, vector<1x32xf32> -> vector<1x32xf32>
    %67 = vector.broadcast %66 : vector<1x32xf32> to vector<16x32xf32>
    %68 = arith.mulf %60, %67 : vector<16x32xf32>
    %cst_35 = arith.constant dense<0.000000e+00> : vector<16xf32>
    %69 = vector.multi_reduction <add>, %68, %cst_35 [1] : vector<16x32xf32> to vector<16xf32>
    %70 = vector.shape_cast %69 : vector<16xf32> to vector<16x1xf32>
    %cst_36 = arith.constant 0.176776692 : f32
    %71 = vector.broadcast %cst_36 : f32 to vector<16x1xf32>
    %72 = arith.mulf %70, %71 : vector<16x1xf32>
    %cst_37 = arith.constant dense<0xFF800000> : vector<1xf32>
    %73 = vector.multi_reduction <maximumf>, %72, %cst_37 [0] : vector<16x1xf32> to vector<1xf32>
    %74 = vector.shape_cast %73 : vector<1xf32> to vector<1x1xf32>
    %75 = vector.broadcast %74 : vector<1x1xf32> to vector<16x1xf32>
    %76 = arith.subf %72, %75 : vector<16x1xf32>
    %77 = math.exp %76 : vector<16x1xf32>
    %cst_38 = arith.constant dense<0.000000e+00> : vector<1xf32>
    %78 = vector.multi_reduction <add>, %77, %cst_38 [0] : vector<16x1xf32> to vector<1xf32>
    %79 = vector.shape_cast %78 : vector<1xf32> to vector<1x1xf32>
    %80 = vector.broadcast %79 : vector<1x1xf32> to vector<16x1xf32>
    %81 = arith.divf %77, %80 : vector<16x1xf32>
    %82 = vector.broadcast %81 : vector<16x1xf32> to vector<16x32xf32>
    %83 = arith.mulf %82, %61 : vector<16x32xf32>
    %cst_39 = arith.constant dense<0.000000e+00> : vector<32xf32>
    %84 = vector.multi_reduction <add>, %83, %cst_39 [0] : vector<16x32xf32> to vector<32xf32>
    %85 = vector.shape_cast %84 : vector<32xf32> to vector<1x32xf32>
    %cst_40 = arith.constant dense<0.000000e+00> : vector<1xf32>
    %86 = vector.multi_reduction <add>, %85, %cst_40 [1] : vector<1x32xf32> to vector<1xf32>
    %87 = vector.shape_cast %86 : vector<1xf32> to vector<1x1xf32>
    %cst_41 = arith.constant 3.200000e+01 : f32
    %88 = vector.broadcast %cst_41 : f32 to vector<1x1xf32>
    %89 = arith.divf %87, %88 : vector<1x1xf32>
    %90 = vector.broadcast %89 : vector<1x1xf32> to vector<1x32xf32>
    %91 = arith.subf %85, %90 : vector<1x32xf32>
    %92 = arith.mulf %91, %91 : vector<1x32xf32>
    %cst_42 = arith.constant dense<0.000000e+00> : vector<1xf32>
    %93 = vector.multi_reduction <add>, %92, %cst_42 [1] : vector<1x32xf32> to vector<1xf32>
    %94 = vector.shape_cast %93 : vector<1xf32> to vector<1x1xf32>
    %cst_43 = arith.constant 3.200000e+01 : f32
    %95 = vector.broadcast %cst_43 : f32 to vector<1x1xf32>
    %96 = arith.divf %94, %95 : vector<1x1xf32>
    %cst_44 = arith.constant 9.99999974E-6 : f32
    %97 = vector.broadcast %cst_44 : f32 to vector<1x1xf32>
    %98 = arith.addf %96, %97 : vector<1x1xf32>
    %99 = math.rsqrt %98 : vector<1x1xf32>
    %100 = vector.broadcast %99 : vector<1x1xf32> to vector<1x32xf32>
    %101 = arith.mulf %91, %100 : vector<1x32xf32>
    %102 = arith.mulf %101, %3 : vector<1x32xf32>
    %103 = arith.addf %102, %4 : vector<1x32xf32>
    %cst_45 = arith.constant dense<0.000000e+00> : vector<1x64xf32>
    %104 = tpu.matmul %103, %5, %cst_45 {dimension_numbers = #tpu.dot_dimension_numbers<[1], [0], [0], [1], [0, 0, 1, 1], [], []>} : vector<1x32xf32>, vector<32x64xf32>, vector<1x64xf32> -> vector<1x64xf32>
    %105 = arith.addf %104, %6 : vector<1x64xf32>
    %c0_46 = arith.constant 0 : index
    %c64 = arith.constant 64 : index
    %106 = vector.load %arg10[%c0_46, %c64] : memref<1x128xf32, #tpu.memory_space<vmem>>, vector<1x64xf32>
    tpu.vector_store %arg10[%c0_46, %c64], %105 {strides = array<i32>} : memref<1x128xf32, #tpu.memory_space<vmem>>, vector<1x64xf32>,
    return
  }
  func.func @transform_0(%arg0: i32) -> (i32, i32) {
    %c0_i32 = arith.constant 0 : i32
    %c0_i32_0 = arith.constant 0 : i32
    %c0_i32_1 = arith.constant 0 : i32
    return %c0_i32, %c0_i32_0 : i32, i32
  }
  func.func @transform_1(%arg0: i32) -> (i32, i32) {
    %c0_i32 = arith.constant 0 : i32
    %c0_i32_0 = arith.constant 0 : i32
    %c0_i32_1 = arith.constant 0 : i32
    return %c0_i32, %c0_i32_0 : i32, i32
  }
  func.func @transform_2(%arg0: i32) -> (i32, i32) {
    %c0_i32 = arith.constant 0 : i32
    %c0_i32_0 = arith.constant 0 : i32
    %c0_i32_1 = arith.constant 0 : i32
    return %c0_i32, %c0_i32_0 : i32, i32
  }
  func.func @transform_3(%arg0: i32) -> (i32, i32) {
    %c0_i32 = arith.constant 0 : i32
    %c0_i32_0 = arith.constant 0 : i32
    %c0_i32_1 = arith.constant 0 : i32
    return %c0_i32, %c0_i32_0 : i32, i32
  }
  func.func @transform_4(%arg0: i32) -> (i32, i32) {
    %c0_i32 = arith.constant 0 : i32
    %c0_i32_0 = arith.constant 0 : i32
    %c0_i32_1 = arith.constant 0 : i32
    return %c0_i32, %c0_i32_0 : i32, i32
  }
  func.func @transform_5(%arg0: i32) -> (i32, i32) {
    %c0_i32 = arith.constant 0 : i32
    %c0_i32_0 = arith.constant 0 : i32
    %c0_i32_1 = arith.constant 0 : i32
    return %c0_i32, %c0_i32_0 : i32, i32
  }
  func.func @transform_6(%arg0: i32) -> (i32, i32) {
    %c0_i32 = arith.constant 0 : i32
    %c0_i32_0 = arith.constant 0 : i32
    %c0_i32_1 = arith.constant 0 : i32
    return %c0_i32, %c0_i32_0 : i32, i32
  }
  func.func @transform_7(%arg0: i32) -> (i32, i32) {
    %c0_i32 = arith.constant 0 : i32
    %c0_i32_0 = arith.constant 0 : i32
    %c0_i32_1 = arith.constant 0 : i32
    return %c0_i32, %c0_i32_0 : i32, i32
  }
  func.func @transform_8(%arg0: i32) -> (i32, i32) {
    %c0_i32 = arith.constant 0 : i32
    %c0_i32_0 = arith.constant 0 : i32
    %c0_i32_1 = arith.constant 0 : i32
    return %c0_i32, %c0_i32_0 : i32, i32
  }
  func.func @transform_9(%arg0: i32) -> (i32, i32) {
    %c0_i32 = arith.constant 0 : i32
    %c0_i32_0 = arith.constant 0 : i32
    %c0_i32_1 = arith.constant 0 : i32
    return %c0_i32, %c0_i32_0 : i32, i32
  }
}

</mosaic_0001>

<llo_original>
// kernel: tpu_custom_call.1
$region0: #{tpu_custom_call.1}
  #allocation0 [shape = 'u32[]', space=smem, size = 0x4, offset = 0x4, fixed_abs, tag = 'smem constant byte address 0x4 - core index']
  #allocation1 [shape = 'u32[144,128]{1,0:T(1,128)}', space=vmem, size = 0x12000, scoped, tag = 'internal scratch']
  %s0 = inlined_call_operand.hbm [shape: f32[32,32], index: 0, kind: input, shape index: {}]
  %s1 = inlined_call_operand.vmem [shape: f32[16,1], index: 1, kind: input, shape index: {}]
  %s2 = inlined_call_operand.hbm [shape: f32[32,32], index: 2, kind: input, shape index: {}]
  %s3 = inlined_call_operand.hbm [shape: f32[32,32], index: 3, kind: input, shape index: {}]
  %s4 = inlined_call_operand.vmem [shape: f32[32,32], index: 4, kind: input, shape index: {}]
  %s5 = inlined_call_operand.vmem [shape: f32[1,32], index: 5, kind: input, shape index: {}]
  %s6 = inlined_call_operand.vmem [shape: f32[1,32], index: 6, kind: input, shape index: {}]
  %s7 = inlined_call_operand.hbm [shape: f32[32,64], index: 7, kind: input, shape index: {}]
  %s8 = inlined_call_operand.vmem [shape: f32[1,64], index: 8, kind: input, shape index: {}]
  %s9 = inlined_call_operand.hbm [shape: f32[1,128], index: 9, kind: output, shape index: {}]
  %s10 = sld [smem:[#allocation0]]
  $region62: #{tpu_custom_call.1} parent=0
    _
  %s12 = ssub.s32 1, %s10
  %s13 = scalar_select 0, %s12, %s10
  $region1: #{tpu_custom_call.1} parent=0
    #allocation2 [shape = 'u8[16384]{0}', space=vmem, size = 0x4000, scoped, tag = 'input window, operand 0, single buffered']
    #allocation3 [shape = 's32[1]{0}', space=sflag, size = 0x4, scoped, tag = 'scoped memory for tpu_custom_call.1']
    #allocation4 [shape = 's32[1]{0}', space=sflag, size = 0x4, scoped, tag = 'scoped memory for tpu_custom_call.1']
    #allocation5 [shape = 'u8[16384]{0}', space=vmem, size = 0x4000, scoped, tag = 'input window, operand 2, single buffered']
    #allocation6 [shape = 's32[1]{0}', space=sflag, size = 0x4, scoped, tag = 'scoped memory for tpu_custom_call.1']
    #allocation7 [shape = 'u8[16384]{0}', space=vmem, size = 0x4000, scoped, tag = 'input window, operand 3, single buffered']
    #allocation8 [shape = 'u8[16384]{0}', space=vmem, size = 0x4000, scoped, tag = 'input window, operand 7, single buffered']
    #allocation9 [shape = 's32[1]{0}', space=sflag, size = 0x4, scoped, tag = 'scoped memory for tpu_custom_call.1']
    #allocation10 [shape = 'u8[512]{0}', space=vmem, size = 0x400, scoped, tag = 'output window, operand 0, single buffered']
    %14 = vsyncpa [#allocation3], 0
    %15 = vsyncpa [#allocation6], 0
    %16 = vsyncpa [#allocation9], 0
    %17 = vsyncpa [#allocation4], 0
    // Predicated region
    $region2: #{tpu_custom_call.1} parent=1 // pred_check
      _
    $region3: #{tpu_custom_call.1} parent=1 // pred_check_branch
      %19 = sbr.rel (0) target = $region5
    $region4: #{tpu_custom_call.1} parent=1 // pred_region
      %s21 = ssub.s32 512, 512
      %22 = vsyncadd [#allocation3], %s21
      %s23 = sshll.u32 [#allocation2], 4
      %s24 = int_to_ptr.vmem [resolvable:$true] %s23
      %29 = dma.hbm_to_vmem [thread:$0]  %s0, 512, %s24, [#allocation3], 128, 128, 8
    $region5: #{tpu_custom_call.1} parent=1 // pred_fallthru
      _
    // Predicated region
    $region6: #{tpu_custom_call.1} parent=1 // pred_check
      _
    $region7: #{tpu_custom_call.1} parent=1 // pred_check_branch
      %31 = sbr.rel (0) target = $region9
    $region8: #{tpu_custom_call.1} parent=1 // pred_region
      _
    $region9: #{tpu_custom_call.1} parent=1 // pred_fallthru
      _
    // Predicated region
    $region10: #{tpu_custom_call.1} parent=1 // pred_check
      _
    $region11: #{tpu_custom_call.1} parent=1 // pred_check_branch
      %33 = sbr.rel (0) target = $region13
    $region12: #{tpu_custom_call.1} parent=1 // pred_region
      %s35 = ssub.s32 512, 512
      %36 = vsyncadd [#allocation6], %s35
      %s37 = sshll.u32 [#allocation5], 4
      %s38 = int_to_ptr.vmem [resolvable:$true] %s37
      %43 = dma.hbm_to_vmem [thread:$0]  %s2, 512, %s38, [#allocation6], 128, 128, 8
    $region13: #{tpu_custom_call.1} parent=1 // pred_fallthru
      _
    // Predicated region
    $region14: #{tpu_custom_call.1} parent=1 // pred_check
      _
    $region15: #{tpu_custom_call.1} parent=1 // pred_check_branch
      %45 = sbr.rel (0) target = $region17
    $region16: #{tpu_custom_call.1} parent=1 // pred_region
      %s47 = ssub.s32 512, 512
      %48 = vsyncadd [#allocation6], %s47
      %s49 = sshll.u32 [#allocation7], 4
      %s50 = int_to_ptr.vmem [resolvable:$true] %s49
      %55 = dma.hbm_to_vmem [thread:$0]  %s3, 512, %s50, [#allocation6], 128, 128, 8
    $region17: #{tpu_custom_call.1} parent=1 // pred_fallthru
      _
    // Predicated region
    $region18: #{tpu_custom_call.1} parent=1 // pred_check
      _
    $region19: #{tpu_custom_call.1} parent=1 // pred_check_branch
      %57 = sbr.rel (0) target = $region21
    $region20: #{tpu_custom_call.1} parent=1 // pred_region
      _
    $region21: #{tpu_custom_call.1} parent=1 // pred_fallthru
      _
    // Predicated region
    $region22: #{tpu_custom_call.1} parent=1 // pred_check
      _
    $region23: #{tpu_custom_call.1} parent=1 // pred_check_branch
      %59 = sbr.rel (0) target = $region25
    $region24: #{tpu_custom_call.1} parent=1 // pred_region
      _
    $region25: #{tpu_custom_call.1} parent=1 // pred_fallthru
      _
    // Predicated region
    $region26: #{tpu_custom_call.1} parent=1 // pred_check
      _
    $region27: #{tpu_custom_call.1} parent=1 // pred_check_branch
      %61 = sbr.rel (0) target = $region29
    $region28: #{tpu_custom_call.1} parent=1 // pred_region
      _
    $region29: #{tpu_custom_call.1} parent=1 // pred_fallthru
      _
    // Predicated region
    $region30: #{tpu_custom_call.1} parent=1 // pred_check
      _
    $region31: #{tpu_custom_call.1} parent=1 // pred_check_branch
      %63 = sbr.rel (0) target = $region33
    $region32: #{tpu_custom_call.1} parent=1 // pred_region
      %s65 = ssub.s32 512, 512
      %66 = vsyncadd [#allocation9], %s65
      %s67 = sshll.u32 [#allocation8], 4
      %s68 = int_to_ptr.vmem [resolvable:$true] %s67
      %73 = dma.hbm_to_vmem [thread:$0]  %s7, 512, %s68, [#allocation9], 128, 128, 8
    $region33: #{tpu_custom_call.1} parent=1 // pred_fallthru
      _
    // Predicated region
    $region34: #{tpu_custom_call.1} parent=1 // pred_check
      _
    $region35: #{tpu_custom_call.1} parent=1 // pred_check_branch
      %75 = sbr.rel (0) target = $region37
    $region36: #{tpu_custom_call.1} parent=1 // pred_region
      _
    $region37: #{tpu_custom_call.1} parent=1 // pred_fallthru
      _
    // Predicated region
    $region38: #{tpu_custom_call.1} parent=1 // pred_check
      _
    $region39: #{tpu_custom_call.1} parent=1 // pred_check_branch
      %77 = sbr.rel (0) target = $region41
    $region40: #{tpu_custom_call.1} parent=1 // pred_region
      %78 = dma.done [#allocation3], 512
    $region41: #{tpu_custom_call.1} parent=1 // pred_fallthru
      _
    // Predicated region
    $region42: #{tpu_custom_call.1} parent=1 // pred_check
      _
    $region43: #{tpu_custom_call.1} parent=1 // pred_check_branch
      %80 = sbr.rel (0) target = $region45
    $region44: #{tpu_custom_call.1} parent=1 // pred_region
      %81 = dma.done [#allocation6], 512
    $region45: #{tpu_custom_call.1} parent=1 // pred_fallthru
      _
    // Predicated region
    $region46: #{tpu_custom_call.1} parent=1 // pred_check
      _
    $region47: #{tpu_custom_call.1} parent=1 // pred_check_branch
      %83 = sbr.rel (0) target = $region49
    $region48: #{tpu_custom_call.1} parent=1 // pred_region
      %84 = dma.done [#allocation6], 512
    $region49: #{tpu_custom_call.1} parent=1 // pred_fallthru
      _
    // Predicated region
    $region50: #{tpu_custom_call.1} parent=1 // pred_check
      _
    $region51: #{tpu_custom_call.1} parent=1 // pred_check_branch
      %86 = sbr.rel (0) target = $region53
    $region52: #{tpu_custom_call.1} parent=1 // pred_region
      %87 = dma.done [#allocation9], 512
    $region53: #{tpu_custom_call.1} parent=1 // pred_fallthru
      _
    %v88 = vld [vmem:[#allocation2] sm:$0xff]
    %v89 = vld [vmem:[#allocation2 + $0x8] sm:$0xff]
    %v90 = vld [vmem:[#allocation2 + $0x10] sm:$0xff]
    %v91 = vld [vmem:[#allocation2 + $0x18] sm:$0xff]
    %v92 = vld [vmem:[%s1] sm:$0xff]
    %v93 = vld [vmem:[%s1 + $0x8] sm:$0xff]
    %v94 = vld [vmem:[#allocation5] sm:$0xff]
    %v95 = vld [vmem:[#allocation5 + $0x8] sm:$0xff]
    %v96 = vld [vmem:[#allocation5 + $0x10] sm:$0xff]
    %v97 = vld [vmem:[#allocation5 + $0x18] sm:$0xff]
    %v98 = vld [vmem:[%s5] sm:$0x1]
    %v99 = vld [vmem:[%s6] sm:$0x1]
    %v100 = vld [vmem:[#allocation8] sm:$0xff]
    %v101 = vld [vmem:[#allocation8 + $0x8] sm:$0xff]
    %v102 = vld [vmem:[#allocation8 + $0x10] sm:$0xff]
    %v103 = vld [vmem:[#allocation8 + $0x18] sm:$0xff]
    %v104 = vld [vmem:[%s8] sm:$0x1]
    %v105 = vld [vmem:[#allocation7] sm:$0xff]
    %v106 = vld [vmem:[#allocation7 + $0x8] sm:$0xff]
    %v107 = vld [vmem:[#allocation7 + $0x10] sm:$0xff]
    %v108 = vld [vmem:[#allocation7 + $0x18] sm:$0xff]
    %vm109 = vcmask 261120
    %v111 = vsel %vm109, %v88, 0
    %v114 = vsel %vm109, %v89, 0
    %v117 = vsel %vm109, %v90, 0
    %v120 = vsel %vm109, %v91, 0
    %122 = vmatprep.subr.mxu0 0.0
    %123 = vmatpush1.msra.mxu0 %v105
    %124 = vmatprep.subr.mxu0 0.0
    %125 = vmatpush1.msra.mxu0 %v106
    %126 = vmatprep.subr.mxu0 0.0
    %127 = vmatpush1.msra.mxu0 %v107
    %128 = vmatprep.subr.mxu0 0.0
    %129 = vmatpush1.msra.mxu0 %v108
    %130 = vmatprep.subr.mxu0 0.0
    %131 = vmatpush1.msra.mxu0 0.0
    %132 = vmatprep.subr.mxu0 0.0
    %133 = vmatpush1.msra.mxu0 0.0
    %134 = vmatprep.subr.mxu0 0.0
    %135 = vmatpush1.msra.mxu0 0.0
    %136 = vmatprep.subr.mxu0 0.0
    %137 = vmatpush1.msra.mxu0 0.0
    %138 = vmatprep.subr.mxu0 0.0
    %139 = vmatpush1.msra.mxu0 0.0
    %140 = vmatprep.subr.mxu0 0.0
    %141 = vmatpush1.msra.mxu0 0.0
    %142 = vmatprep.subr.mxu0 0.0
    %143 = vmatpush1.msra.mxu0 0.0
    %144 = vmatprep.subr.mxu0 0.0
    %145 = vmatpush1.msra.mxu0 0.0
    %146 = vmatprep.subr.mxu0 0.0
    %147 = vmatpush1.msra.mxu0 0.0
    %148 = vmatprep.subr.mxu0 0.0
    %149 = vmatpush1.msra.mxu0 0.0
    %150 = vmatprep.subr.mxu0 0.0
    %151 = vmatpush1.msra.mxu0 0.0
    %152 = vmatprep.subr.mxu0 0.0
    %153 = vmatpush1.msra.mxu0 0.0
    %154 = vmatprep.subr.mxu0 0.0
    %155 = vmatpush1.msra.mxu0 0.0
    %156 = vmatprep.subr.mxu0 0.0
    %157 = vmatpush1.msra.mxu0 0.0
    %158 = vmatprep.subr.mxu0 0.0
    %159 = vmatpush1.msra.mxu0 0.0
    %160 = vmatprep.subr.mxu0 0.0
    %161 = vmatpush1.msra.mxu0 0.0
    %162 = vmatprep.subr.mxu0 0.0
    %163 = vmatpush1.msra.mxu0 0.0
    %164 = vmatprep.subr.mxu0 0.0
    %165 = vmatpush1.msra.mxu0 0.0
    %166 = vmatprep.subr.mxu0 0.0
    %167 = vmatpush1.msra.mxu0 0.0
    %168 = vmatprep.subr.mxu0 0.0
    %169 = vmatpush1.msra.mxu0 0.0
    %170 = vmatprep.subr.mxu0 0.0
    %171 = vmatpush1.msra.mxu0 0.0
    %172 = vmatprep.subr.mxu0 0.0
    %173 = vmatpush1.msra.mxu0 0.0
    %174 = vmatprep.subr.mxu0 0.0
    %175 = vmatpush1.msra.mxu0 0.0
    %176 = vmatprep.subr.mxu0 0.0
    %177 = vmatpush1.msra.mxu0 0.0
    %178 = vmatprep.subr.mxu0 0.0
    %179 = vmatpush1.msra.mxu0 0.0
    %180 = vmatprep.subr.mxu0 0.0
    %181 = vmatpush1.msra.mxu0 0.0
    %182 = vmatprep.subr.mxu0 0.0
    %183 = vmatpush1.msra.mxu0 0.0
    %184 = vmatprep.subr.mxu0 0.0
    %185 = vmatpush1.msra.mxu0 0.0
    %186 = vmatprep.mubr.f32.mxu0 0.0
    %187 = vmatmul.mubr.f32.gmra.mrb[0].mxu0 %v111
    %v188 = vpop.f32.mrb[0].mxu0
    %v189 = vadd.f32 0.0, %v188
    %v190 = vpop.f32.mrb[0].mxu0
    %191 = vmatprep.mubr.f32.mxu0 0.0
    %192 = vmatmul.mubr.f32.gmra.mrb[0].mxu0 %v114
    %v193 = vpop.f32.mrb[0].mxu0
    %v194 = vadd.f32 0.0, %v193
    %v195 = vpop.f32.mrb[0].mxu0
    %196 = vmatprep.mubr.f32.mxu0 0.0
    %197 = vmatmul.mubr.f32.gmra.mrb[0].mxu0 %v117
    %v198 = vpop.f32.mrb[0].mxu0
    %v199 = vadd.f32 0.0, %v198
    %v200 = vpop.f32.mrb[0].mxu0
    %201 = vmatprep.mubr.f32.mxu0 0.0
    %202 = vmatmul.mubr.f32.gmra.mrb[0].mxu0 %v120
    %v203 = vpop.f32.mrb[0].mxu0
    %v204 = vadd.f32 0.0, %v203
    %v205 = vpop.f32.mrb[0].mxu0
    %206 = vdwg.mxu0
    %v207 = vld [vmem:[%s4] sm:$0xff]
    %v208 = vld [vmem:[%s4 + $0x8] sm:$0xff]
    %v209 = vld [vmem:[%s4 + $0x10] sm:$0xff]
    %v210 = vld [vmem:[%s4 + $0x18] sm:$0xff]
    %211 = vmatprep.subr.mxu0 0.0
    %212 = vmatpush1.msra.mxu0 %v207
    %213 = vmatprep.subr.mxu0 0.0
    %214 = vmatpush1.msra.mxu0 %v208
    %215 = vmatprep.subr.mxu0 0.0
    %216 = vmatpush1.msra.mxu0 %v209
    %217 = vmatprep.subr.mxu0 0.0
    %218 = vmatpush1.msra.mxu0 %v210
    %219 = vmatprep.subr.mxu0 0.0
    %220 = vmatpush1.msra.mxu0 0.0
    %221 = vmatprep.subr.mxu0 0.0
    %222 = vmatpush1.msra.mxu0 0.0
    %223 = vmatprep.subr.mxu0 0.0
    %224 = vmatpush1.msra.mxu0 0.0
    %225 = vmatprep.subr.mxu0 0.0
    %226 = vmatpush1.msra.mxu0 0.0
    %227 = vmatprep.subr.mxu0 0.0
    %228 = vmatpush1.msra.mxu0 0.0
    %229 = vmatprep.subr.mxu0 0.0
    %230 = vmatpush1.msra.mxu0 0.0
    %231 = vmatprep.subr.mxu0 0.0
    %232 = vmatpush1.msra.mxu0 0.0
    %233 = vmatprep.subr.mxu0 0.0
    %234 = vmatpush1.msra.mxu0 0.0
    %235 = vmatprep.subr.mxu0 0.0
    %236 = vmatpush1.msra.mxu0 0.0
    %237 = vmatprep.subr.mxu0 0.0
    %238 = vmatpush1.msra.mxu0 0.0
    %239 = vmatprep.subr.mxu0 0.0
    %240 = vmatpush1.msra.mxu0 0.0
    %241 = vmatprep.subr.mxu0 0.0
    %242 = vmatpush1.msra.mxu0 0.0
    %243 = vmatprep.subr.mxu0 0.0
    %244 = vmatpush1.msra.mxu0 0.0
    %245 = vmatprep.subr.mxu0 0.0
    %246 = vmatpush1.msra.mxu0 0.0
    %247 = vmatprep.subr.mxu0 0.0
    %248 = vmatpush1.msra.mxu0 0.0
    %249 = vmatprep.subr.mxu0 0.0
    %250 = vmatpush1.msra.mxu0 0.0
    %251 = vmatprep.subr.mxu0 0.0
    %252 = vmatpush1.msra.mxu0 0.0
    %253 = vmatprep.subr.mxu0 0.0
    %254 = vmatpush1.msra.mxu0 0.0
    %255 = vmatprep.subr.mxu0 0.0
    %256 = vmatpush1.msra.mxu0 0.0
    %257 = vmatprep.subr.mxu0 0.0
    %258 = vmatpush1.msra.mxu0 0.0
    %259 = vmatprep.subr.mxu0 0.0
    %260 = vmatpush1.msra.mxu0 0.0
    %261 = vmatprep.subr.mxu0 0.0
    %262 = vmatpush1.msra.mxu0 0.0
    %263 = vmatprep.subr.mxu0 0.0
    %264 = vmatpush1.msra.mxu0 0.0
    %265 = vmatprep.subr.mxu0 0.0
    %266 = vmatpush1.msra.mxu0 0.0
    %267 = vmatprep.subr.mxu0 0.0
    %268 = vmatpush1.msra.mxu0 0.0
    %269 = vmatprep.subr.mxu0 0.0
    %270 = vmatpush1.msra.mxu0 0.0
    %271 = vmatprep.subr.mxu0 0.0
    %272 = vmatpush1.msra.mxu0 0.0
    %273 = vmatprep.subr.mxu0 0.0
    %274 = vmatpush1.msra.mxu0 0.0
    %275 = vmatprep.mubr.f32.mxu0 0.0
    %276 = vmatmul.mubr.f32.gmra.mrb[0].mxu0 %v111
    %v277 = vpop.f32.mrb[0].mxu0
    %v278 = vadd.f32 0.0, %v277
    %v279 = vpop.f32.mrb[0].mxu0
    %280 = vmatprep.mubr.f32.mxu0 0.0
    %281 = vmatmul.mubr.f32.gmra.mrb[0].mxu0 %v114
    %v282 = vpop.f32.mrb[0].mxu0
    %v283 = vadd.f32 0.0, %v282
    %v284 = vpop.f32.mrb[0].mxu0
    %285 = vmatprep.mubr.f32.mxu0 0.0
    %286 = vmatmul.mubr.f32.gmra.mrb[0].mxu0 %v117
    %v287 = vpop.f32.mrb[0].mxu0
    %v288 = vadd.f32 0.0, %v287
    %v289 = vpop.f32.mrb[0].mxu0
    %290 = vmatprep.mubr.f32.mxu0 0.0
    %291 = vmatmul.mubr.f32.gmra.mrb[0].mxu0 %v120
    %v292 = vpop.f32.mrb[0].mxu0
    %v293 = vadd.f32 0.0, %v292
    %v294 = vpop.f32.mrb[0].mxu0
    %295 = vdwg.mxu0
    %297 = vset.pattern.permute.xlu0 0
    %298 = vperm.xlu0 %297, %v92
    %v299 = vpop.permute.xlu0 %298
    %302 = vset.pattern.permute.xlu0 0
    %303 = vperm.xlu0 %302, %v93
    %v304 = vpop.permute.xlu0 %303
    %v306 = vmul.f32 %v88, %v299
    %v307 = vmul.f32 %v89, %v304
    %v308 = vsel %vm109, %v306, 0.0
    %v309 = vsel %vm109, %v307, 0.0
    %v310 = vadd.f32 %v308, %v309
    %v311 = vrot.slane %v310, 4
    %v312 = vadd.f32 %v310, %v311
    %v313 = vrot.slane %v312, 2
    %v314 = vadd.f32 %v312, %v313
    %v315 = vrot.slane %v314, 1
    %v316 = vadd.f32 %v314, %v315
    %v318 = vsel %vm109, %v316, 0
    %320 = vmatprep.subr.mxu0 0.0
    %321 = vmatpush1.msra.mxu0 %v94
    %322 = vmatprep.subr.mxu0 0.0
    %323 = vmatpush1.msra.mxu0 %v95
    %324 = vmatprep.subr.mxu0 0.0
    %325 = vmatpush1.msra.mxu0 %v96
    %326 = vmatprep.subr.mxu0 0.0
    %327 = vmatpush1.msra.mxu0 %v97
    %328 = vmatprep.subr.mxu0 0.0
    %329 = vmatpush1.msra.mxu0 0.0
    %330 = vmatprep.subr.mxu0 0.0
    %331 = vmatpush1.msra.mxu0 0.0
    %332 = vmatprep.subr.mxu0 0.0
    %333 = vmatpush1.msra.mxu0 0.0
    %334 = vmatprep.subr.mxu0 0.0
    %335 = vmatpush1.msra.mxu0 0.0
    %336 = vmatprep.subr.mxu0 0.0
    %337 = vmatpush1.msra.mxu0 0.0
    %338 = vmatprep.subr.mxu0 0.0
    %339 = vmatpush1.msra.mxu0 0.0
    %340 = vmatprep.subr.mxu0 0.0
    %341 = vmatpush1.msra.mxu0 0.0
    %342 = vmatprep.subr.mxu0 0.0
    %343 = vmatpush1.msra.mxu0 0.0
    %344 = vmatprep.subr.mxu0 0.0
    %345 = vmatpush1.msra.mxu0 0.0
    %346 = vmatprep.subr.mxu0 0.0
    %347 = vmatpush1.msra.mxu0 0.0
    %348 = vmatprep.subr.mxu0 0.0
    %349 = vmatpush1.msra.mxu0 0.0
    %350 = vmatprep.subr.mxu0 0.0
    %351 = vmatpush1.msra.mxu0 0.0
    %352 = vmatprep.subr.mxu0 0.0
    %353 = vmatpush1.msra.mxu0 0.0
    %354 = vmatprep.subr.mxu0 0.0
    %355 = vmatpush1.msra.mxu0 0.0
    %356 = vmatprep.subr.mxu0 0.0
    %357 = vmatpush1.msra.mxu0 0.0
    %358 = vmatprep.subr.mxu0 0.0
    %359 = vmatpush1.msra.mxu0 0.0
    %360 = vmatprep.subr.mxu0 0.0
    %361 = vmatpush1.msra.mxu0 0.0
    %362 = vmatprep.subr.mxu0 0.0
    %363 = vmatpush1.msra.mxu0 0.0
    %364 = vmatprep.subr.mxu0 0.0
    %365 = vmatpush1.msra.mxu0 0.0
    %366 = vmatprep.subr.mxu0 0.0
    %367 = vmatpush1.msra.mxu0 0.0
    %368 = vmatprep.subr.mxu0 0.0
    %369 = vmatpush1.msra.mxu0 0.0
    %370 = vmatprep.subr.mxu0 0.0
    %371 = vmatpush1.msra.mxu0 0.0
    %372 = vmatprep.subr.mxu0 0.0
    %373 = vmatpush1.msra.mxu0 0.0
    %374 = vmatprep.subr.mxu0 0.0
    %375 = vmatpush1.msra.mxu0 0.0
    %376 = vmatprep.subr.mxu0 0.0
    %377 = vmatpush1.msra.mxu0 0.0
    %378 = vmatprep.subr.mxu0 0.0
    %379 = vmatpush1.msra.mxu0 0.0
    %380 = vmatprep.subr.mxu0 0.0
    %381 = vmatpush1.msra.mxu0 0.0
    %382 = vmatprep.subr.mxu0 0.0
    %383 = vmatpush1.msra.mxu0 0.0
    %384 = vmatprep.mubr.f32.mxu0 0.0
    %385 = vmatmul.mubr.f32.gmra.mrb[0].mxu0 %v318
    %v386 = vpop.f32.mrb[0].mxu0
    %v387 = vadd.f32 0.0, %v386
    %v388 = vpop.f32.mrb[0].mxu0
    %389 = vdwg.mxu0
    %v390 = vlaneseq
    %v391 = vshrl.u32 %v390, 7
    %v392 = vsub.s32 0, %v391
    %v393 = vrot.slane %v387, %v392
    %v394 = vmul.f32 %v189, %v393
    %v395 = vmul.f32 %v194, %v393
    %v396 = vsel %vm109, %v394, 0.0
    %397 = vadd.xlane.f32.xlu0 %v396
    %v398 = vpop.xlane.xlu0 %397
    %v399 = vsel %vm109, %v395, 0.0
    %400 = vadd.xlane.f32.xlu0 %v399
    %v401 = vpop.xlane.xlu0 %400
    %v402 = vmul.f32 %v398, 0.17677669
    %v403 = vmul.f32 %v401, 0.17677669
    %v404 = vmax.f32 %v402, %v403
    %v405 = vrot.slane %v404, 4
    %v406 = vmax.f32 %v404, %v405
    %v407 = vrot.slane %v406, 2
    %v408 = vmax.f32 %v406, %v407
    %v409 = vrot.slane %v408, 1
    %v410 = vmax.f32 %v408, %v409
    %v411 = vsub.f32 %v402, %v410
    %v412 = vsub.f32 %v403, %v410
    %v413 = vmul.f32 %v411, 1.442695
    %v414 = vpow.pop %v413
    %v415 = vmul.f32 %v412, 1.442695
    %v416 = vpow.pop %v415
    %v417 = vadd.f32 %v414, %v416
    %v418 = vrot.slane %v417, 4
    %v419 = vadd.f32 %v417, %v418
    %v420 = vrot.slane %v419, 2
    %v421 = vadd.f32 %v419, %v420
    %v422 = vrot.slane %v421, 1
    %v423 = vadd.f32 %v421, %v422
    %v424 = vrcp.pop %v423
    %v425 = vmul.f32 %v414, %v424
    %v426 = vmul.f32 %v416, %v424
    %v427 = vmul.f32 %v425, %v278
    %v428 = vmul.f32 %v426, %v283
    %v429 = vsel %vm109, %v427, 0.0
    %v430 = vsel %vm109, %v428, 0.0
    %v431 = vadd.f32 %v429, %v430
    %v432 = vrot.slane %v431, 4
    %v433 = vadd.f32 %v431, %v432
    %v434 = vrot.slane %v433, 2
    %v435 = vadd.f32 %v433, %v434
    %v436 = vrot.slane %v435, 1
    %v437 = vadd.f32 %v435, %v436
    %v438 = vsel %vm109, %v437, 0.0
    %439 = vadd.xlane.f32.xlu0 %v438
    %v440 = vpop.xlane.xlu0 %439
    %v441 = vrcp.pop 32.0
    %v442 = vmul.f32 %v440, %v441
    %v443 = vsub.f32 %v437, %v442
    %v444 = vmul.f32 %v443, %v443
    %v445 = vsel %vm109, %v444, 0.0
    %446 = vadd.xlane.f32.xlu0 %v445
    %v447 = vpop.xlane.xlu0 %446
    %v448 = vmul.f32 %v447, %v441
    %v449 = vadd.f32 %v448, 1e-05
    %v450 = vrsqrt.pop %v449
    %v451 = vmul.f32 %v443, %v450
    %v452 = vmul.f32 %v451, %v98
    %v453 = vadd.f32 %v452, %v99
    %v455 = vsel %vm109, %v453, 0
    %457 = vmatprep.subr.mxu0 0.0
    %458 = vmatpush1.msra.mxu0 %v100
    %459 = vmatprep.subr.mxu0 0.0
    %460 = vmatpush1.msra.mxu0 %v101
    %461 = vmatprep.subr.mxu0 0.0
    %462 = vmatpush1.msra.mxu0 %v102
    %463 = vmatprep.subr.mxu0 0.0
    %464 = vmatpush1.msra.mxu0 %v103
    %465 = vmatprep.subr.mxu0 0.0
    %466 = vmatpush1.msra.mxu0 0.0
    %467 = vmatprep.subr.mxu0 0.0
    %468 = vmatpush1.msra.mxu0 0.0
    %469 = vmatprep.subr.mxu0 0.0
    %470 = vmatpush1.msra.mxu0 0.0
    %471 = vmatprep.subr.mxu0 0.0
    %472 = vmatpush1.msra.mxu0 0.0
    %473 = vmatprep.subr.mxu0 0.0
    %474 = vmatpush1.msra.mxu0 0.0
    %475 = vmatprep.subr.mxu0 0.0
    %476 = vmatpush1.msra.mxu0 0.0
    %477 = vmatprep.subr.mxu0 0.0
    %478 = vmatpush1.msra.mxu0 0.0
    %479 = vmatprep.subr.mxu0 0.0
    %480 = vmatpush1.msra.mxu0 0.0
    %481 = vmatprep.subr.mxu0 0.0
    %482 = vmatpush1.msra.mxu0 0.0
    %483 = vmatprep.subr.mxu0 0.0
    %484 = vmatpush1.msra.mxu0 0.0
    %485 = vmatprep.subr.mxu0 0.0
    %486 = vmatpush1.msra.mxu0 0.0
    %487 = vmatprep.subr.mxu0 0.0
    %488 = vmatpush1.msra.mxu0 0.0
    %489 = vmatprep.subr.mxu0 0.0
    %490 = vmatpush1.msra.mxu0 0.0
    %491 = vmatprep.subr.mxu0 0.0
    %492 = vmatpush1.msra.mxu0 0.0
    %493 = vmatprep.subr.mxu0 0.0
    %494 = vmatpush1.msra.mxu0 0.0
    %495 = vmatprep.subr.mxu0 0.0
    %496 = vmatpush1.msra.mxu0 0.0
    %497 = vmatprep.subr.mxu0 0.0
    %498 = vmatpush1.msra.mxu0 0.0
    %499 = vmatprep.subr.mxu0 0.0
    %500 = vmatpush1.msra.mxu0 0.0
    %501 = vmatprep.subr.mxu0 0.0
    %502 = vmatpush1.msra.mxu0 0.0
    %503 = vmatprep.subr.mxu0 0.0
    %504 = vmatpush1.msra.mxu0 0.0
    %505 = vmatprep.subr.mxu0 0.0
    %506 = vmatpush1.msra.mxu0 0.0
    %507 = vmatprep.subr.mxu0 0.0
    %508 = vmatpush1.msra.mxu0 0.0
    %509 = vmatprep.subr.mxu0 0.0
    %510 = vmatpush1.msra.mxu0 0.0
    %511 = vmatprep.subr.mxu0 0.0
    %512 = vmatpush1.msra.mxu0 0.0
    %513 = vmatprep.subr.mxu0 0.0
    %514 = vmatpush1.msra.mxu0 0.0
    %515 = vmatprep.subr.mxu0 0.0
    %516 = vmatpush1.msra.mxu0 0.0
    %517 = vmatprep.subr.mxu0 0.0
    %518 = vmatpush1.msra.mxu0 0.0
    %519 = vmatprep.subr.mxu0 0.0
    %520 = vmatpush1.msra.mxu0 0.0
    %521 = vmatprep.mubr.f32.mxu0 0.0
    %522 = vmatmul.mubr.f32.gmra.mrb[0].mxu0 %v455
    %v523 = vpop.f32.mrb[0].mxu0
    %v524 = vadd.f32 %v104, %v523
    %v525 = vpop.f32.mrb[0].mxu0
    %526 = vdwg.mxu0
    %vm527 = vcmask 516096
    %528 = vst.msk [vmem:[#allocation10] sm:$0x1] %vm527, %v524
    %v529 = vmul.f32 %v90, %v299
    %v530 = vmul.f32 %v91, %v304
    %v531 = vsel %vm109, %v529, 0.0
    %v532 = vsel %vm109, %v530, 0.0
    %v533 = vadd.f32 %v531, %v532
    %v534 = vrot.slane %v533, 4
    %v535 = vadd.f32 %v533, %v534
    %v536 = vrot.slane %v535, 2
    %v537 = vadd.f32 %v535, %v536
    %v538 = vrot.slane %v537, 1
    %v539 = vadd.f32 %v537, %v538
    %v541 = vsel %vm109, %v539, 0
    %543 = vmatprep.subr.mxu0 0.0
    %544 = vmatpush1.msra.mxu0 %v94
    %545 = vmatprep.subr.mxu0 0.0
    %546 = vmatpush1.msra.mxu0 %v95
    %547 = vmatprep.subr.mxu0 0.0
    %548 = vmatpush1.msra.mxu0 %v96
    %549 = vmatprep.subr.mxu0 0.0
    %550 = vmatpush1.msra.mxu0 %v97
    %551 = vmatprep.subr.mxu0 0.0
    %552 = vmatpush1.msra.mxu0 0.0
    %553 = vmatprep.subr.mxu0 0.0
    %554 = vmatpush1.msra.mxu0 0.0
    %555 = vmatprep.subr.mxu0 0.0
    %556 = vmatpush1.msra.mxu0 0.0
    %557 = vmatprep.subr.mxu0 0.0
    %558 = vmatpush1.msra.mxu0 0.0
    %559 = vmatprep.subr.mxu0 0.0
    %560 = vmatpush1.msra.mxu0 0.0
    %561 = vmatprep.subr.mxu0 0.0
    %562 = vmatpush1.msra.mxu0 0.0
    %563 = vmatprep.subr.mxu0 0.0
    %564 = vmatpush1.msra.mxu0 0.0
    %565 = vmatprep.subr.mxu0 0.0
    %566 = vmatpush1.msra.mxu0 0.0
    %567 = vmatprep.subr.mxu0 0.0
    %568 = vmatpush1.msra.mxu0 0.0
    %569 = vmatprep.subr.mxu0 0.0
    %570 = vmatpush1.msra.mxu0 0.0
    %571 = vmatprep.subr.mxu0 0.0
    %572 = vmatpush1.msra.mxu0 0.0
    %573 = vmatprep.subr.mxu0 0.0
    %574 = vmatpush1.msra.mxu0 0.0
    %575 = vmatprep.subr.mxu0 0.0
    %576 = vmatpush1.msra.mxu0 0.0
    %577 = vmatprep.subr.mxu0 0.0
    %578 = vmatpush1.msra.mxu0 0.0
    %579 = vmatprep.subr.mxu0 0.0
    %580 = vmatpush1.msra.mxu0 0.0
    %581 = vmatprep.subr.mxu0 0.0
    %582 = vmatpush1.msra.mxu0 0.0
    %583 = vmatprep.subr.mxu0 0.0
    %584 = vmatpush1.msra.mxu0 0.0
    %585 = vmatprep.subr.mxu0 0.0
    %586 = vmatpush1.msra.mxu0 0.0
    %587 = vmatprep.subr.mxu0 0.0
    %588 = vmatpush1.msra.mxu0 0.0
    %589 = vmatprep.subr.mxu0 0.0
    %590 = vmatpush1.msra.mxu0 0.0
    %591 = vmatprep.subr.mxu0 0.0
    %592 = vmatpush1.msra.mxu0 0.0
    %593 = vmatprep.subr.mxu0 0.0
    %594 = vmatpush1.msra.mxu0 0.0
    %595 = vmatprep.subr.mxu0 0.0
    %596 = vmatpush1.msra.mxu0 0.0
    %597 = vmatprep.subr.mxu0 0.0
    %598 = vmatpush1.msra.mxu0 0.0
    %599 = vmatprep.subr.mxu0 0.0
    %600 = vmatpush1.msra.mxu0 0.0
    %601 = vmatprep.subr.mxu0 0.0
    %602 = vmatpush1.msra.mxu0 0.0
    %603 = vmatprep.subr.mxu0 0.0
    %604 = vmatpush1.msra.mxu0 0.0
    %605 = vmatprep.subr.mxu0 0.0
    %606 = vmatpush1.msra.mxu0 0.0
    %607 = vmatprep.mubr.f32.mxu0 0.0
    %608 = vmatmul.mubr.f32.gmra.mrb[0].mxu0 %v541
    %v609 = vpop.f32.mrb[0].mxu0
    %v610 = vadd.f32 0.0, %v609
    %v611 = vpop.f32.mrb[0].mxu0
    %612 = vdwg.mxu0
    %v613 = vlaneseq
    %v614 = vshrl.u32 %v613, 7
    %v615 = vsub.s32 0, %v614
    %v616 = vrot.slane %v610, %v615
    %v617 = vmul.f32 %v199, %v616
    %v618 = vmul.f32 %v204, %v616
    %v619 = vsel %vm109, %v617, 0.0
    %620 = vadd.xlane.f32.xlu0 %v619
    %v621 = vpop.xlane.xlu0 %620
    %v622 = vsel %vm109, %v618, 0.0
    %623 = vadd.xlane.f32.xlu0 %v622
    %v624 = vpop.xlane.xlu0 %623
    %v625 = vmul.f32 %v621, 0.17677669
    %v626 = vmul.f32 %v624, 0.17677669
    %v627 = vmax.f32 %v625, %v626
    %v628 = vrot.slane %v627, 4
    %v629 = vmax.f32 %v627, %v628
    %v630 = vrot.slane %v629, 2
    %v631 = vmax.f32 %v629, %v630
    %v632 = vrot.slane %v631, 1
    %v633 = vmax.f32 %v631, %v632
    %v634 = vsub.f32 %v625, %v633
    %v635 = vsub.f32 %v626, %v633
    %v636 = vmul.f32 %v634, 1.442695
    %v637 = vpow.pop %v636
    %v638 = vmul.f32 %v635, 1.442695
    %v639 = vpow.pop %v638
    %v640 = vadd.f32 %v637, %v639
    %v641 = vrot.slane %v640, 4
    %v642 = vadd.f32 %v640, %v641
    %v643 = vrot.slane %v642, 2
    %v644 = vadd.f32 %v642, %v643
    %v645 = vrot.slane %v644, 1
    %v646 = vadd.f32 %v644, %v645
    %v647 = vrcp.pop %v646
    %v648 = vmul.f32 %v637, %v647
    %v649 = vmul.f32 %v639, %v647
    %v650 = vmul.f32 %v648, %v288
    %v651 = vmul.f32 %v649, %v293
    %v652 = vsel %vm109, %v650, 0.0
    %v653 = vsel %vm109, %v651, 0.0
    %v654 = vadd.f32 %v652, %v653
    %v655 = vrot.slane %v654, 4
    %v656 = vadd.f32 %v654, %v655
    %v657 = vrot.slane %v656, 2
    %v658 = vadd.f32 %v656, %v657
    %v659 = vrot.slane %v658, 1
    %v660 = vadd.f32 %v658, %v659
    %v661 = vsel %vm109, %v660, 0.0
    %662 = vadd.xlane.f32.xlu0 %v661
    %v663 = vpop.xlane.xlu0 %662
    %v664 = vmul.f32 %v663, %v441
    %v665 = vsub.f32 %v660, %v664
    %v666 = vmul.f32 %v665, %v665
    %v667 = vsel %vm109, %v666, 0.0
    %668 = vadd.xlane.f32.xlu0 %v667
    %v669 = vpop.xlane.xlu0 %668
    %v670 = vmul.f32 %v669, %v441
    %v671 = vadd.f32 %v670, 1e-05
    %v672 = vrsqrt.pop %v671
    %v673 = vmul.f32 %v665, %v672
    %v674 = vmul.f32 %v673, %v98
    %v675 = vadd.f32 %v674, %v99
    %v677 = vsel %vm109, %v675, 0
    %679 = vmatprep.subr.mxu0 0.0
    %680 = vmatpush1.msra.mxu0 %v100
    %681 = vmatprep.subr.mxu0 0.0
    %682 = vmatpush1.msra.mxu0 %v101
    %683 = vmatprep.subr.mxu0 0.0
    %684 = vmatpush1.msra.mxu0 %v102
    %685 = vmatprep.subr.mxu0 0.0
    %686 = vmatpush1.msra.mxu0 %v103
    %687 = vmatprep.subr.mxu0 0.0
    %688 = vmatpush1.msra.mxu0 0.0
    %689 = vmatprep.subr.mxu0 0.0
    %690 = vmatpush1.msra.mxu0 0.0
    %691 = vmatprep.subr.mxu0 0.0
    %692 = vmatpush1.msra.mxu0 0.0
    %693 = vmatprep.subr.mxu0 0.0
    %694 = vmatpush1.msra.mxu0 0.0
    %695 = vmatprep.subr.mxu0 0.0
    %696 = vmatpush1.msra.mxu0 0.0
    %697 = vmatprep.subr.mxu0 0.0
    %698 = vmatpush1.msra.mxu0 0.0
    %699 = vmatprep.subr.mxu0 0.0
    %700 = vmatpush1.msra.mxu0 0.0
    %701 = vmatprep.subr.mxu0 0.0
    %702 = vmatpush1.msra.mxu0 0.0
    %703 = vmatprep.subr.mxu0 0.0
    %704 = vmatpush1.msra.mxu0 0.0
    %705 = vmatprep.subr.mxu0 0.0
    %706 = vmatpush1.msra.mxu0 0.0
    %707 = vmatprep.subr.mxu0 0.0
    %708 = vmatpush1.msra.mxu0 0.0
    %709 = vmatprep.subr.mxu0 0.0
    %710 = vmatpush1.msra.mxu0 0.0
    %711 = vmatprep.subr.mxu0 0.0
    %712 = vmatpush1.msra.mxu0 0.0
    %713 = vmatprep.subr.mxu0 0.0
    %714 = vmatpush1.msra.mxu0 0.0
    %715 = vmatprep.subr.mxu0 0.0
    %716 = vmatpush1.msra.mxu0 0.0
    %717 = vmatprep.subr.mxu0 0.0
    %718 = vmatpush1.msra.mxu0 0.0
    %719 = vmatprep.subr.mxu0 0.0
    %720 = vmatpush1.msra.mxu0 0.0
    %721 = vmatprep.subr.mxu0 0.0
    %722 = vmatpush1.msra.mxu0 0.0
    %723 = vmatprep.subr.mxu0 0.0
    %724 = vmatpush1.msra.mxu0 0.0
    %725 = vmatprep.subr.mxu0 0.0
    %726 = vmatpush1.msra.mxu0 0.0
    %727 = vmatprep.subr.mxu0 0.0
    %728 = vmatpush1.msra.mxu0 0.0
    %729 = vmatprep.subr.mxu0 0.0
    %730 = vmatpush1.msra.mxu0 0.0
    %731 = vmatprep.subr.mxu0 0.0
    %732 = vmatpush1.msra.mxu0 0.0
    %733 = vmatprep.subr.mxu0 0.0
    %734 = vmatpush1.msra.mxu0 0.0
    %735 = vmatprep.subr.mxu0 0.0
    %736 = vmatpush1.msra.mxu0 0.0
    %737 = vmatprep.subr.mxu0 0.0
    %738 = vmatpush1.msra.mxu0 0.0
    %739 = vmatprep.subr.mxu0 0.0
    %740 = vmatpush1.msra.mxu0 0.0
    %741 = vmatprep.subr.mxu0 0.0
    %742 = vmatpush1.msra.mxu0 0.0
    %743 = vmatprep.mubr.f32.mxu0 0.0
    %744 = vmatmul.mubr.f32.gmra.mrb[0].mxu0 %v677
    %v745 = vpop.f32.mrb[0].mxu0
    %v746 = vadd.f32 %v104, %v745
    %v747 = vpop.f32.mrb[0].mxu0
    %748 = vdwg.mxu0
    %750 = vrot.lane.b32.xlu0 %v746, 64
    %v751 = vpop.permute.xlu0 %750
    %vm753 = vcmask 1040896
    %754 = vst.msk [vmem:[#allocation10] sm:$0x1] %vm753, %v751
    // Predicated region
    $region54: #{tpu_custom_call.1} parent=1 // pred_check
      _
    $region55: #{tpu_custom_call.1} parent=1 // pred_check_branch
      %756 = sbr.rel (0) target = $region57
    $region56: #{tpu_custom_call.1} parent=1 // pred_region
      %s758 = ssub.s32 16, 16
      %759 = vsyncadd [#allocation4], %s758
      %s761 = sshll.u32 [#allocation10], 4
      %s762 = int_to_ptr.vmem [resolvable:$true] %s761
      %764 = dma.vmem_to_hbm [thread:$0]  %s762, 16, %s9, [#allocation4]
    $region57: #{tpu_custom_call.1} parent=1 // pred_fallthru
      _
    // Predicated region
    $region58: #{tpu_custom_call.1} parent=1 // pred_check
      _
    $region59: #{tpu_custom_call.1} parent=1 // pred_check_branch
      %766 = sbr.rel (0) target = $region61
    $region60: #{tpu_custom_call.1} parent=1 // pred_region
      %767 = dma.done [#allocation4], 16
    $region61: #{tpu_custom_call.1} parent=1 // pred_fallthru
      _
    %768 = vsyncpa [#allocation3], 1
    %769 = vsyncpa [#allocation6], 1
    %770 = vsyncpa [#allocation9], 1
    %771 = vsyncpa [#allocation4], 1

</llo_original>
